<compile_context>
chip_gen: v5e
topology: v5e:2x2
jax: 0.10.0
libtpu: 0.0.40
codegen_flags: <defaults>
</compile_context>

<pallas_src>
import jax
import jax.numpy as jnp
from jax.experimental import pallas as pl
from jax.experimental.pallas import tpu as pltpu

NEG_SLOPE = 0.01   # nn.LeakyReLU default negative_slope
LN_EPS = 1e-5      # nn.LayerNorm default eps


def _round_up(x, m):
    return ((x + m - 1) // m) * m


def _cdiv(a, b):
    return (a + b - 1) // b


def _pick_tk(n_genes, max_tk):
    """Largest K-tile that divides n_genes, is a multiple of 128, and <= max_tk."""
    if n_genes <= max_tk:
        return n_genes
    t = (max_tk // 128) * 128
    while t >= 128:
        if n_genes % t == 0:
            return t
        t -= 128
    return n_genes  # fallback: load whole (see TODO above)


def _resident_spec(shape):
    """Constant-index operand kept resident in VMEM; single-buffered if supported."""
    try:
        return pl.BlockSpec(shape, lambda i, k: (0, 0), pipeline_mode=pl.Buffered(1))
    except TypeError:  # older BlockSpec without pipeline_mode: fall back (2 buffers)
        return pl.BlockSpec(shape, lambda i, k: (0, 0))


# ---------------------------------------------------------------------------
# Fused kernel:
#   grid = (batch tiles, K tiles over n_genes)
#   k axis: stream x/W1 tiles, accumulate first Linear into f32 scratch
#   last k step: bias+LeakyReLU+LayerNorm, remaining Linear/LeakyReLU/LayerNorm
#   layers, optional projection head, write output tile.
# ---------------------------------------------------------------------------
def _make_fused_encoder_kernel(n_layers, projection, matmul_dtype):
    n_weights = n_layers + (2 if projection else 0)

    def kernel(*refs):
        x_ref = refs[0]
        o_ref = refs[-2]
        acc_ref = refs[-1]
        p = refs[1:-2]
        w_refs = p[:n_weights]            # W0 (K-tiled), W1..W_{L-1}, [pw1, pw2]
        vecs_ref = p[n_weights]           # packed (R, d_model) f32: b/gamma/beta rows
        pb1_ref = p[n_weights + 1] if projection else None

        k = pl.program_id(1)
        nk = pl.num_programs(1)

        @pl.when(k == 0)
        def _():
            acc_ref[...] = jnp.zeros_like(acc_ref)

        # First-layer partial matmul, K-streamed (operands already matmul_dtype).
        acc_ref[...] += jnp.dot(x_ref[...], w_refs[0][...],
                                preferred_element_type=jnp.float32)

        @pl.when(k == nk - 1)
        def _():
            vecs = vecs_ref[...]                          # (R, d_model) f32

            def row(r):
                return vecs[r:r + 1, :]                   # (1, d_model)

            def leaky(v):
                return jnp.where(v >= 0.0, v, NEG_SLOPE * v)

            def layer_tail(y, r0):
                # bias -> LeakyReLU -> LayerNorm (biased var, like PyTorch), f32 math.
                y = leaky(y + row(r0))
                mean = jnp.mean(y, axis=-1, keepdims=True)
                var = jnp.mean(jnp.square(y - mean), axis=-1, keepdims=True)
                return (y - mean) * jax.lax.rsqrt(var + LN_EPS) * row(r0 + 1) + row(r0 + 2)
                # Dropout: identity in eval mode.

            h = layer_tail(acc_ref[...], 0)
            for l in range(1, n_layers):
                y = jnp.dot(h.astype(matmul_dtype), w_refs[l][...],
                            preferred_element_type=jnp.float32)
                h = layer_tail(y, 3 * l)

            if projection:
                pw1, pw2 = w_refs[n_layers], w_refs[n_layers + 1]
                t = leaky(jnp.dot(h.astype(matmul_dtype), pw1[...],
                                  preferred_element_type=jnp.float32) + pb1_ref[...])
                h = jnp.dot(t.astype(matmul_dtype), pw2[...],
                            preferred_element_type=jnp.float32) + row(3 * n_layers)

            o_ref[...] = h.astype(o_ref.dtype)

    return kernel


def dense_encoder_forward(params, x, *, matmul_dtype=jnp.bfloat16,
                          max_tb=256, max_tk=2048):
    """Fused forward pass: one pallas_call for the whole encoder (+ projection)."""
    B, n_genes = x.shape
    layers = params["layers"]
    proj = params["projection"]
    n_layers = len(layers)
    d_model = layers[0][0].shape[1]
    out_dtype = x.dtype

    # ---- batch tiling: no padding copy; >= 2 steps when possible (v7x megacore) ----
    if B <= 8:
        tb = B
    else:
        tb = min(max_tb, _round_up(_cdiv(B, 2), 8))
    grid_b = _cdiv(B, tb)

    # ---- K tiling of the first (big) layer ----
    tk = _pick_tk(n_genes, max_tk)
    grid_k = max(1, n_genes // tk)

    # Cast x upstream so its DMA is already in matmul_dtype (halves bytes for bf16).
    if x.dtype != matmul_dtype:
        x = x.astype(matmul_dtype)

    def nbytes(a):
        return int(a.size) * jnp.dtype(a.dtype).itemsize

    # ---- flat operands & specs ----
    flat = []
    in_specs = [pl.BlockSpec((tb, tk), lambda i, k: (i, k))]        # x, batch+K tiled

    w0 = layers[0][0].astype(matmul_dtype)                          # streamed along K
    flat.append(w0)
    in_specs.append(pl.BlockSpec((tk, d_model), lambda i, k: (k, 0)))

    for (w, _, _, _) in layers[1:]:                                 # resident weights
        flat.append(w.astype(matmul_dtype))
        in_specs.append(_resident_spec(w.shape))

    if proj is not None:
        pw1, pb1, pw2, _ = proj
        flat.append(pw1.astype(matmul_dtype)); in_specs.append(_resident_spec(pw1.shape))
        flat.append(pw2.astype(matmul_dtype)); in_specs.append(_resident_spec(pw2.shape))

    # Packed per-layer vectors: one resident operand instead of 3*n_layers (+1) DMAs.
    rows = []
    for (_, b, g, beta) in layers:
        rows += [b, g, beta]
    if proj is not None:
        rows.append(proj[3])                                        # projection b2
    vecs = jnp.stack([r.astype(jnp.float32) for r in rows], axis=0)  # (R, d_model)
    flat.append(vecs)
    in_specs.append(_resident_spec(vecs.shape))

    if proj is not None:
        pb1_row = proj[1].reshape(1, -1).astype(jnp.float32)        # (1, 4*d_model)
        flat.append(pb1_row)
        in_specs.append(_resident_spec(pb1_row.shape))

    # ---- VMEM budget: resident params (x1) + streamed tiles (x2) + acc + headroom ----
    mm_isz = jnp.dtype(matmul_dtype).itemsize
    out_isz = jnp.dtype(out_dtype).itemsize
    resident_bytes = sum(nbytes(a) for a in flat) - nbytes(w0)
    streamed_bytes = 2 * (tb * tk * mm_isz + tk * d_model * mm_isz)
    out_bytes = 2 * tb * d_model * out_isz
    acc_bytes = tb * d_model * 4
    needed = resident_bytes + streamed_bytes + out_bytes + acc_bytes
    vmem_limit = int(max(32 << 20, min(needed + (8 << 20), 64 << 20)))

    # ---- cost estimate (advisory) ----
    flops = 2 * B * n_genes * d_model + (n_layers - 1) * 2 * B * d_model * d_model
    if proj is not None:
        flops += 2 * (2 * B * d_model * (4 * d_model))
    bytes_accessed = nbytes(x) + sum(nbytes(a) for a in flat) + B * d_model * out_isz

    kernel = _make_fused_encoder_kernel(n_layers, proj is not None, matmul_dtype)

    out = pl.pallas_call(
        kernel,
        out_shape=jax.ShapeDtypeStruct((B, d_model), out_dtype),
        grid_spec=pltpu.PrefetchScalarGridSpec(
            num_scalar_prefetch=0,
            grid=(grid_b, grid_k),
            in_specs=in_specs,
            out_specs=pl.BlockSpec((tb, d_model), lambda i, k: (i, 0)),
            scratch_shapes=[pltpu.VMEM((tb, d_model), jnp.float32)],
        ),
        compiler_params=pltpu.CompilerParams(
            dimension_semantics=("parallel", "arbitrary"),
            vmem_limit_bytes=vmem_limit,
        ),
        cost_estimate=pl.CostEstimate(
            flops=int(flops),
            transcendentals=int(B * n_layers),
            bytes_accessed=int(bytes_accessed),
        ),
    )(x, *flat)
    return out


# ---------------------------------------------------------------------------
# Parameter construction (deterministic, synthetic) + pure-JAX reference
# ---------------------------------------------------------------------------
def init_dense_encoder_params(key, n_genes, d_model, n_layers, projection):
    params = {"layers": [], "projection": None}
    dims = [(n_genes, d_model)] + [(d_model, d_model)] * (n_layers - 1)
    for (n_in, n_out) in dims:
        key, kw, kb = jax.random.split(key, 3)
        w = 0.02 * jax.random.normal(kw, (n_in, n_out), jnp.float32)   # stored as W.T
        b = 0.02 * jax.random.normal(kb, (n_out,), jnp.float32)
        gamma = jnp.ones((n_out,), jnp.float32)
        beta = jnp.zeros((n_out,), jnp.float32)
        params["layers"].append((w, b, gamma, beta))
    if projection:
        key, k1, k2, k3, k4 = jax.random.split(key, 5)
        w1 = 0.02 * jax.random.normal(k1, (d_model, 4 * d_model), jnp.float32)
        b1 = 0.02 * jax.random.normal(k2, (4 * d_model,), jnp.float32)
        w2 = 0.02 * jax.random.normal(k3, (4 * d_model, d_model), jnp.float32)
        b2 = 0.02 * jax.random.normal(k4, (d_model,), jnp.float32)
        params["projection"] = (w1, b1, w2, b2)
    return params


def dense_encoder_reference(params, x):
    def leaky(v):
        return jnp.where(v >= 0.0, v, NEG_SLOPE * v)
    for (w, b, gamma, beta) in params["layers"]:
        y = leaky(x @ w + b)
        mean = jnp.mean(y, axis=-1, keepdims=True)
        var = jnp.mean(jnp.square(y - mean), axis=-1, keepdims=True)
        x = (y - mean) * jax.lax.rsqrt(var + LN_EPS) * gamma + beta
    if params["projection"] is not None:
        w1, b1, w2, b2 = params["projection"]
        x = leaky(x @ w1 + b1) @ w2 + b2
    return x


if __name__ == "__main__":
    # Small, TPU-aligned shapes implied by the module's forward: x is [batch, n_genes].
    B, N_GENES, D_MODEL, N_LAYERS = 16, 256, 128, 2
    PROJECTION = True

    key = jax.random.PRNGKey(0)
    key, kx, kp = jax.random.split(key, 3)
    x = jax.random.normal(kx, (B, N_GENES), jnp.float32)
    params = init_dense_encoder_params(kp, N_GENES, D_MODEL, N_LAYERS, PROJECTION)
    ref = dense_encoder_reference(params, x)

    # Exact f32-matmul path (tight tolerance vs reference).
    out_f32 = jax.block_until_ready(
        dense_encoder_forward(params, x, matmul_dtype=jnp.float32))
    assert out_f32.shape == (B, D_MODEL), out_f32.shape
    assert jnp.allclose(out_f32, ref, rtol=1e-4, atol=1e-4), \
        float(jnp.max(jnp.abs(out_f32 - ref)))

    # Default bf16 MXU-operand path (loose tolerance: bf16 mantissa).
    out_bf16 = jax.block_until_ready(dense_encoder_forward(params, x))
    assert out_bf16.shape == (B, D_MODEL)
    assert bool(jnp.all(jnp.isfinite(out_bf16)))
    assert jnp.allclose(out_bf16, ref, rtol=1e-1, atol=1e-1), \
        float(jnp.max(jnp.abs(out_bf16 - ref)))

    # Ragged batch: no padding copy, partial last block overhangs, OOB rows dropped.
    out_rag = jax.block_until_ready(
        dense_encoder_forward(params, x[:13], matmul_dtype=jnp.float32))
    assert out_rag.shape == (13, D_MODEL)
    assert jnp.allclose(out_rag, ref[:13], rtol=1e-4, atol=1e-4), \
        float(jnp.max(jnp.abs(out_rag - ref[:13])))

    print("KERNEL_OK")
</pallas_src>

<mosaic_0001>
module attributes {stable_mosaic.version = 11 : i64} {
  func.func @kernel(%arg0: i32, %arg1: i32, %arg2: memref<8x256xf32, #tpu.memory_space<vmem>>, %arg3: memref<256x128xf32, #tpu.memory_space<vmem>>, %arg4: memref<128x128xf32, #tpu.memory_space<vmem>>, %arg5: memref<128x512xf32, #tpu.memory_space<vmem>>, %arg6: memref<512x128xf32, #tpu.memory_space<vmem>>, %arg7: memref<7x128xf32, #tpu.memory_space<vmem>>, %arg8: memref<1x512xf32, #tpu.memory_space<vmem>>, %arg9: memref<8x128xf32, #tpu.memory_space<vmem>>, %arg10: memref<8x128xf32, #tpu.memory_space<vmem>>) attributes {dimension_semantics = [#tpu.dimension_semantics<parallel>, #tpu.dimension_semantics<arbitrary>], iteration_bounds = array<i64: 2, 1>, scalar_prefetch = 0 : i64, scratch_operands = 1 : i64, tpu.core_type = #tpu.core_type<tc>, window_params = [{transform_indices = @transform_0, window_bounds = array<i64: 8, 256>}, {transform_indices = @transform_1, window_bounds = array<i64: 256, 128>}, {pipeline_mode = #tpu.pipeline_mode<synchronous>, transform_indices = @transform_2, window_bounds = array<i64: 128, 128>}, {pipeline_mode = #tpu.pipeline_mode<synchronous>, transform_indices = @transform_3, window_bounds = array<i64: 128, 512>}, {pipeline_mode = #tpu.pipeline_mode<synchronous>, transform_indices = @transform_4, window_bounds = array<i64: 512, 128>}, {pipeline_mode = #tpu.pipeline_mode<synchronous>, transform_indices = @transform_5, window_bounds = array<i64: 7, 128>}, {pipeline_mode = #tpu.pipeline_mode<synchronous>, transform_indices = @transform_6, window_bounds = array<i64: 1, 512>}, {transform_indices = @transform_7, window_bounds = array<i64: 8, 128>}]} {
    %c0_i32 = arith.constant 0 : i32
    %0 = arith.cmpi eq, %arg1, %c0_i32 : i32
    %1 = arith.extui %0 : i1 to i32
    %c0_i32_0 = arith.constant 0 : i32
    %2 = arith.cmpi ne, %1, %c0_i32_0 : i32
    scf.if %2 {
      %cst_10 = arith.constant 0.000000e+00 : f32
      %12 = vector.broadcast %cst_10 : f32 to vector<8x128xf32>
      %c0_11 = arith.constant 0 : index
      %c0_12 = arith.constant 0 : index
      %13 = vector.load %arg10[%c0_11, %c0_12] : memref<8x128xf32, #tpu.memory_space<vmem>>, vector<8x128xf32>
      tpu.vector_store %arg10[%c0_11, %c0_12], %12 {strides = array<i32>} : memref<8x128xf32, #tpu.memory_space<vmem>>, vector<8x128xf32>,
    } else {
    }
    %c0 = arith.constant 0 : index
    %c0_1 = arith.constant 0 : index
    %3 = vector.load %arg10[%c0, %c0_1] : memref<8x128xf32, #tpu.memory_space<vmem>>, vector<8x128xf32>
    %c0_2 = arith.constant 0 : index
    %c0_3 = arith.constant 0 : index
    %4 = vector.load %arg2[%c0_2, %c0_3] : memref<8x256xf32, #tpu.memory_space<vmem>>, vector<8x256xf32>
    %c0_4 = arith.constant 0 : index
    %c0_5 = arith.constant 0 : index
    %5 = vector.load %arg3[%c0_4, %c0_5] : memref<256x128xf32, #tpu.memory_space<vmem>>, vector<256x128xf32>
    %cst = arith.constant dense<0.000000e+00> : vector<8x128xf32>
    %6 = tpu.matmul %4, %5, %cst {dimension_numbers = #tpu.dot_dimension_numbers<[1], [0], [0], [1], [0, 0, 1, 1], [], []>} : vector<8x256xf32>, vector<256x128xf32>, vector<8x128xf32> -> vector<8x128xf32>
    %7 = arith.addf %3, %6 : vector<8x128xf32>
    %c0_6 = arith.constant 0 : index
    %c0_7 = arith.constant 0 : index
    %8 = vector.load %arg10[%c0_6, %c0_7] : memref<8x128xf32, #tpu.memory_space<vmem>>, vector<8x128xf32>
    tpu.vector_store %arg10[%c0_6, %c0_7], %7 {strides = array<i32>} : memref<8x128xf32, #tpu.memory_space<vmem>>, vector<8x128xf32>,
    %c0_i32_8 = arith.constant 0 : i32
    %9 = arith.cmpi eq, %arg1, %c0_i32_8 : i32
    %10 = arith.extui %9 : i1 to i32
    %c0_i32_9 = arith.constant 0 : i32
    %11 = arith.cmpi ne, %10, %c0_i32_9 : i32
    scf.if %11 {
      %c0_10 = arith.constant 0 : index
      %c0_11 = arith.constant 0 : index
      %12 = vector.load %arg7[%c0_10, %c0_11] : memref<7x128xf32, #tpu.memory_space<vmem>>, vector<7x128xf32>
      %c0_12 = arith.constant 0 : index
      %c0_13 = arith.constant 0 : index
      %13 = vector.load %arg10[%c0_12, %c0_13] : memref<8x128xf32, #tpu.memory_space<vmem>>, vector<8x128xf32>
      %14 = vector.extract_strided_slice %12 {offsets = [0, 0], sizes = [1, 128], strides = [1, 1]} : vector<7x128xf32> to vector<1x128xf32>
      %15 = vector.broadcast %14 : vector<1x128xf32> to vector<8x128xf32>
      %16 = arith.addf %13, %15 : vector<8x128xf32>
      %cst_14 = arith.constant 0.000000e+00 : f32
      %17 = vector.broadcast %cst_14 : f32 to vector<8x128xf32>
      %18 = arith.cmpf oge, %16, %17 : vector<8x128xf32>
      %cst_15 = arith.constant 0.00999999977 : f32
      %19 = vector.broadcast %cst_15 : f32 to vector<8x128xf32>
      %20 = arith.mulf %19, %16 : vector<8x128xf32>
      %21 = arith.select %18, %16, %20 : vector<8x128xi1>, vector<8x128xf32>
      %cst_16 = arith.constant dense<0.000000e+00> : vector<8xf32>
      %22 = vector.multi_reduction <add>, %21, %cst_16 [1] : vector<8x128xf32> to vector<8xf32>
      %23 = vector.shape_cast %22 : vector<8xf32> to vector<8x1xf32>
      %cst_17 = arith.constant 1.280000e+02 : f32
      %24 = vector.broadcast %cst_17 : f32 to vector<8x1xf32>
      %25 = arith.divf %23, %24 : vector<8x1xf32>
      %26 = vector.broadcast %25 : vector<8x1xf32> to vector<8x128xf32>
      %27 = arith.subf %21, %26 : vector<8x128xf32>
      %28 = arith.mulf %27, %27 : vector<8x128xf32>
      %cst_18 = arith.constant dense<0.000000e+00> : vector<8xf32>
      %29 = vector.multi_reduction <add>, %28, %cst_18 [1] : vector<8x128xf32> to vector<8xf32>
      %30 = vector.shape_cast %29 : vector<8xf32> to vector<8x1xf32>
      %cst_19 = arith.constant 1.280000e+02 : f32
      %31 = vector.broadcast %cst_19 : f32 to vector<8x1xf32>
      %32 = arith.divf %30, %31 : vector<8x1xf32>
      %33 = vector.broadcast %25 : vector<8x1xf32> to vector<8x128xf32>
      %34 = arith.subf %21, %33 : vector<8x128xf32>
      %cst_20 = arith.constant 9.99999974E-6 : f32
      %35 = vector.broadcast %cst_20 : f32 to vector<8x1xf32>
      %36 = arith.addf %32, %35 : vector<8x1xf32>
      %37 = math.rsqrt %36 : vector<8x1xf32>
      %38 = vector.broadcast %37 : vector<8x1xf32> to vector<8x128xf32>
      %39 = arith.mulf %34, %38 : vector<8x128xf32>
      %40 = vector.extract_strided_slice %12 {offsets = [1, 0], sizes = [1, 128], strides = [1, 1]} : vector<7x128xf32> to vector<1x128xf32>
      %41 = vector.broadcast %40 : vector<1x128xf32> to vector<8x128xf32>
      %42 = arith.mulf %39, %41 : vector<8x128xf32>
      %43 = vector.extract_strided_slice %12 {offsets = [2, 0], sizes = [1, 128], strides = [1, 1]} : vector<7x128xf32> to vector<1x128xf32>
      %44 = vector.broadcast %43 : vector<1x128xf32> to vector<8x128xf32>
      %45 = arith.addf %42, %44 : vector<8x128xf32>
      %c0_21 = arith.constant 0 : index
      %c0_22 = arith.constant 0 : index
      %46 = vector.load %arg4[%c0_21, %c0_22] : memref<128x128xf32, #tpu.memory_space<vmem>>, vector<128x128xf32>
      %cst_23 = arith.constant dense<0.000000e+00> : vector<8x128xf32>
      %47 = tpu.matmul %45, %46, %cst_23 {dimension_numbers = #tpu.dot_dimension_numbers<[1], [0], [0], [1], [0, 0, 1, 1], [], []>} : vector<8x128xf32>, vector<128x128xf32>, vector<8x128xf32> -> vector<8x128xf32>
      %48 = vector.extract_strided_slice %12 {offsets = [3, 0], sizes = [1, 128], strides = [1, 1]} : vector<7x128xf32> to vector<1x128xf32>
      %49 = vector.broadcast %48 : vector<1x128xf32> to vector<8x128xf32>
      %50 = arith.addf %47, %49 : vector<8x128xf32>
      %cst_24 = arith.constant 0.000000e+00 : f32
      %51 = vector.broadcast %cst_24 : f32 to vector<8x128xf32>
      %52 = arith.cmpf oge, %50, %51 : vector<8x128xf32>
      %cst_25 = arith.constant 0.00999999977 : f32
      %53 = vector.broadcast %cst_25 : f32 to vector<8x128xf32>
      %54 = arith.mulf %53, %50 : vector<8x128xf32>
      %55 = arith.select %52, %50, %54 : vector<8x128xi1>, vector<8x128xf32>
      %cst_26 = arith.constant dense<0.000000e+00> : vector<8xf32>
      %56 = vector.multi_reduction <add>, %55, %cst_26 [1] : vector<8x128xf32> to vector<8xf32>
      %57 = vector.shape_cast %56 : vector<8xf32> to vector<8x1xf32>
      %cst_27 = arith.constant 1.280000e+02 : f32
      %58 = vector.broadcast %cst_27 : f32 to vector<8x1xf32>
      %59 = arith.divf %57, %58 : vector<8x1xf32>
      %60 = vector.broadcast %59 : vector<8x1xf32> to vector<8x128xf32>
      %61 = arith.subf %55, %60 : vector<8x128xf32>
      %62 = arith.mulf %61, %61 : vector<8x128xf32>
      %cst_28 = arith.constant dense<0.000000e+00> : vector<8xf32>
      %63 = vector.multi_reduction <add>, %62, %cst_28 [1] : vector<8x128xf32> to vector<8xf32>
      %64 = vector.shape_cast %63 : vector<8xf32> to vector<8x1xf32>
      %cst_29 = arith.constant 1.280000e+02 : f32
      %65 = vector.broadcast %cst_29 : f32 to vector<8x1xf32>
      %66 = arith.divf %64, %65 : vector<8x1xf32>
      %67 = vector.broadcast %59 : vector<8x1xf32> to vector<8x128xf32>
      %68 = arith.subf %55, %67 : vector<8x128xf32>
      %cst_30 = arith.constant 9.99999974E-6 : f32
      %69 = vector.broadcast %cst_30 : f32 to vector<8x1xf32>
      %70 = arith.addf %66, %69 : vector<8x1xf32>
      %71 = math.rsqrt %70 : vector<8x1xf32>
      %72 = vector.broadcast %71 : vector<8x1xf32> to vector<8x128xf32>
      %73 = arith.mulf %68, %72 : vector<8x128xf32>
      %74 = vector.extract_strided_slice %12 {offsets = [4, 0], sizes = [1, 128], strides = [1, 1]} : vector<7x128xf32> to vector<1x128xf32>
      %75 = vector.broadcast %74 : vector<1x128xf32> to vector<8x128xf32>
      %76 = arith.mulf %73, %75 : vector<8x128xf32>
      %77 = vector.extract_strided_slice %12 {offsets = [5, 0], sizes = [1, 128], strides = [1, 1]} : vector<7x128xf32> to vector<1x128xf32>
      %78 = vector.broadcast %77 : vector<1x128xf32> to vector<8x128xf32>
      %79 = arith.addf %76, %78 : vector<8x128xf32>
      %c0_31 = arith.constant 0 : index
      %c0_32 = arith.constant 0 : index
      %80 = vector.load %arg5[%c0_31, %c0_32] : memref<128x512xf32, #tpu.memory_space<vmem>>, vector<128x512xf32>
      %cst_33 = arith.constant dense<0.000000e+00> : vector<8x512xf32>
      %81 = tpu.matmul %79, %80, %cst_33 {dimension_numbers = #tpu.dot_dimension_numbers<[1], [0], [0], [1], [0, 0, 1, 1], [], []>} : vector<8x128xf32>, vector<128x512xf32>, vector<8x512xf32> -> vector<8x512xf32>
      %c0_34 = arith.constant 0 : index
      %c0_35 = arith.constant 0 : index
      %82 = vector.load %arg8[%c0_34, %c0_35] : memref<1x512xf32, #tpu.memory_space<vmem>>, vector<1x512xf32>
      %83 = vector.broadcast %82 : vector<1x512xf32> to vector<8x512xf32>
      %84 = arith.addf %81, %83 : vector<8x512xf32>
      %cst_36 = arith.constant 0.000000e+00 : f32
      %85 = vector.broadcast %cst_36 : f32 to vector<8x512xf32>
      %86 = arith.cmpf oge, %84, %85 : vector<8x512xf32>
      %cst_37 = arith.constant 0.00999999977 : f32
      %87 = vector.broadcast %cst_37 : f32 to vector<8x512xf32>
      %88 = arith.mulf %87, %84 : vector<8x512xf32>
      %89 = arith.select %86, %84, %88 : vector<8x512xi1>, vector<8x512xf32>
      %c0_38 = arith.constant 0 : index
      %c0_39 = arith.constant 0 : index
      %90 = vector.load %arg6[%c0_38, %c0_39] : memref<512x128xf32, #tpu.memory_space<vmem>>, vector<512x128xf32>
      %cst_40 = arith.constant dense<0.000000e+00> : vector<8x128xf32>
      %91 = tpu.matmul %89, %90, %cst_40 {dimension_numbers = #tpu.dot_dimension_numbers<[1], [0], [0], [1], [0, 0, 1, 1], [], []>} : vector<8x512xf32>, vector<512x128xf32>, vector<8x128xf32> -> vector<8x128xf32>
      %92 = vector.extract_strided_slice %12 {offsets = [6, 0], sizes = [1, 128], strides = [1, 1]} : vector<7x128xf32> to vector<1x128xf32>
      %93 = vector.broadcast %92 : vector<1x128xf32> to vector<8x128xf32>
      %94 = arith.addf %91, %93 : vector<8x128xf32>
      %c0_41 = arith.constant 0 : index
      %c0_42 = arith.constant 0 : index
      %95 = vector.load %arg9[%c0_41, %c0_42] : memref<8x128xf32, #tpu.memory_space<vmem>>, vector<8x128xf32>
      tpu.vector_store %arg9[%c0_41, %c0_42], %94 {strides = array<i32>} : memref<8x128xf32, #tpu.memory_space<vmem>>, vector<8x128xf32>,
    } else {
    }
    return
  }
  func.func @transform_0(%arg0: i32, %arg1: i32) -> (i32, i32) {
    %c0_i32 = arith.constant 0 : i32
    return %arg0, %arg1 : i32, i32
  }
  func.func @transform_1(%arg0: i32, %arg1: i32) -> (i32, i32) {
    %c0_i32 = arith.constant 0 : i32
    %c0_i32_0 = arith.constant 0 : i32
    return %arg1, %c0_i32 : i32, i32
  }
  func.func @transform_2(%arg0: i32, %arg1: i32) -> (i32, i32) {
    %c0_i32 = arith.constant 0 : i32
    %c0_i32_0 = arith.constant 0 : i32
    %c0_i32_1 = arith.constant 0 : i32
    return %c0_i32, %c0_i32_0 : i32, i32
  }
  func.func @transform_3(%arg0: i32, %arg1: i32) -> (i32, i32) {
    %c0_i32 = arith.constant 0 : i32
    %c0_i32_0 = arith.constant 0 : i32
    %c0_i32_1 = arith.constant 0 : i32
    return %c0_i32, %c0_i32_0 : i32, i32
  }
  func.func @transform_4(%arg0: i32, %arg1: i32) -> (i32, i32) {
    %c0_i32 = arith.constant 0 : i32
    %c0_i32_0 = arith.constant 0 : i32
    %c0_i32_1 = arith.constant 0 : i32
    return %c0_i32, %c0_i32_0 : i32, i32
  }
  func.func @transform_5(%arg0: i32, %arg1: i32) -> (i32, i32) {
    %c0_i32 = arith.constant 0 : i32
    %c0_i32_0 = arith.constant 0 : i32
    %c0_i32_1 = arith.constant 0 : i32
    return %c0_i32, %c0_i32_0 : i32, i32
  }
  func.func @transform_6(%arg0: i32, %arg1: i32) -> (i32, i32) {
    %c0_i32 = arith.constant 0 : i32
    %c0_i32_0 = arith.constant 0 : i32
    %c0_i32_1 = arith.constant 0 : i32
    return %c0_i32, %c0_i32_0 : i32, i32
  }
  func.func @transform_7(%arg0: i32, %arg1: i32) -> (i32, i32) {
    %c0_i32 = arith.constant 0 : i32
    %c0_i32_0 = arith.constant 0 : i32
    return %arg0, %c0_i32 : i32, i32
  }
}

</mosaic_0001>

<llo_original>
// kernel: tpu_custom_call.1
$region0: #{tpu_custom_call.1}
  #allocation0 [shape = 'u32[]', space=smem, size = 0x4, offset = 0x4, fixed_abs, tag = 'smem constant byte address 0x4 - core index']
  #allocation1 [shape = 'u32[72,128]{1,0:T(1,128)}', space=vmem, size = 0x9000, scoped, tag = 'internal scratch']
  #allocation2 [shape = 'f32[8,128]{1,0:T(8,128)}', space=vmem, size = 0x1000, scoped, tag = 'scratch operand']
  %s0 = inlined_call_operand.hbm [shape: f32[16,256], index: 0, kind: input, shape index: {}]
  %s1 = inlined_call_operand.hbm [shape: f32[256,128], index: 1, kind: input, shape index: {}]
  %s2 = inlined_call_operand.hbm [shape: f32[128,128], index: 2, kind: input, shape index: {}]
  %s3 = inlined_call_operand.hbm [shape: f32[128,512], index: 3, kind: input, shape index: {}]
  %s4 = inlined_call_operand.hbm [shape: f32[512,128], index: 4, kind: input, shape index: {}]
  %s5 = inlined_call_operand.hbm [shape: f32[7,128], index: 5, kind: input, shape index: {}]
  %s6 = inlined_call_operand.vmem [shape: f32[1,512], index: 6, kind: input, shape index: {}]
  %s7 = inlined_call_operand.hbm [shape: f32[16,128], index: 7, kind: output, shape index: {}]
  %s8 = sld [smem:[#allocation0]]
  $region93: #{tpu_custom_call.1} parent=0
    _
  %s10 = ssub.s32 1, %s8
  %s11 = scalar_select 0, %s10, %s8
  $region1: #{tpu_custom_call.1} parent=0
    #allocation3 [shape = 'u8[16384]{0}', space=vmem, size = 0x4000, scoped, tag = 'input window, operand 0']
    #allocation4 [shape = 's32[2]{0}', space=sflag, size = 0x8, scoped, tag = 'scoped memory for tpu_custom_call.1']
    #allocation5 [shape = 's32[2]{0}', space=sflag, size = 0x8, scoped, tag = 'scoped memory for tpu_custom_call.1']
    #allocation6 [shape = 'u8[131072]{0}', space=vmem, size = 0x20000, scoped, tag = 'input window, operand 1, single buffered']
    #allocation7 [shape = 's32[1]{0}', space=sflag, size = 0x4, scoped, tag = 'scoped memory for tpu_custom_call.1']
    #allocation8 [shape = 'u8[65536]{0}', space=vmem, size = 0x10000, scoped, tag = 'input window, operand 2, single buffered']
    #allocation9 [shape = 'u8[262144]{0}', space=vmem, size = 0x40000, scoped, tag = 'input window, operand 3, single buffered']
    #allocation10 [shape = 's32[1]{0}', space=sflag, size = 0x4, scoped, tag = 'scoped memory for tpu_custom_call.1']
    #allocation11 [shape = 'u8[262144]{0}', space=vmem, size = 0x40000, scoped, tag = 'input window, operand 4, single buffered']
    #allocation12 [shape = 'u8[4096]{0}', space=vmem, size = 0x1000, scoped, tag = 'input window, operand 5, single buffered']
    #allocation13 [shape = 's32[1]{0}', space=sflag, size = 0x4, scoped, tag = 'scoped memory for tpu_custom_call.1']
    #allocation14 [shape = 'u8[8192]{0}', space=vmem, size = 0x2000, scoped, tag = 'output window, operand 0']
    %12 = vsyncpa [#allocation4], 0
    %s13 = scalar_lea.sflag [#allocation4], 1
    %14 = vsyncpa %s13, 0
    %15 = vsyncpa [#allocation7], 0
    %16 = vsyncpa [#allocation10], 0
    %17 = vsyncpa [#allocation13], 0
    %18 = vsyncpa [#allocation5], 0
    %s19 = scalar_lea.sflag [#allocation5], 1
    %20 = vsyncpa %s19, 0
    loop: start=0, step=1, limit=4
    $region2: #{tpu_custom_call.1} parent=1 // loop_pre_header
      _
    $region3: #{tpu_custom_call.1} parent=1 // loop_header
      %s22 = sphi 0, %s26
      %p23 = scmp.ge.s32.totalorder %s22, 4
      %s29 = sphi 0, %s41
      %s30 = sphi 0, %s37
      %s31 = sphi 0, %s29
      %s32 = sphi 0, %s30
      %s33 = sphi 0, %s31
      %s34 = sphi 0, %s32
      %s46 = sphi 0, %s48
      %s49 = sphi 0, %s46
      %s50 = sphi 0, %s49
      %s66 = sphi 0, %s50
      %s72 = sphi 0, %s74
      %s75 = sphi 0, %s72
      %s76 = sphi 0, %s75
      %s92 = sphi 0, %s76
      %s96 = sphi 0, %s96
      %s98 = sphi 0, %s96
      %s99 = sphi 0, %s98
      %s113 = sphi 0, %s99
      %s117 = sphi 0, %s117
      %s119 = sphi 0, %s117
      %s120 = sphi 0, %s119
      %s134 = sphi 0, %s120
      %s138 = sphi 0, %s138
      %s140 = sphi 0, %s138
      %s141 = sphi 0, %s140
      %s155 = sphi 0, %s141
      %s159 = sphi 0, %s159
      %s161 = sphi 0, %s159
      %s162 = sphi 0, %s161
      %s176 = sphi 0, %s162
      %s180 = sphi 0, %s180
      %s182 = sphi 0, %s180
      %s183 = sphi 0, %s182
      %s197 = sphi 0, %s183
      %s203 = sphi 0, %s205
      %s206 = sphi 0, %s203
      %s207 = sphi 0, %s206
      %s223 = sphi 0, %s207
    $region4: #{tpu_custom_call.1} parent=1 // loop_header_branch
      %25 = sbr.rel (%p23) target = $region8
    $region5: #{tpu_custom_call.1} parent=1 // loop_body
      %s27 = ssub.s32 %s22, 1
      %s28 = ssub.s32 %s22, 2
      %s35 = sadd.s32 1, %s30
      %p36 = scmp.ge.s32.totalorder %s35, 1
      %s37 = scalar_select %p36, 0, %s35
      %s38 = sadd.s32 1, %s29
      %s39 = scalar_select %p36, %s38, %s29
      %p40 = scmp.ge.s32.totalorder %s39, 2
      %s41 = scalar_select %p40, 0, %s39
      %s42 = ssub.s32 %s29, %s41
      %s43 = ssub.s32 %s30, %s37
      %s44 = sor.u32 %s42, %s43
      %p45 = scmp.eq.s32.totalorder %s44, 0
      %s47 = sadd.s32 %s46, 1
      %s48 = scalar_select %p45, %s46, %s47
      %p51 = pneg %p45
      %p52 = scmp.eq.s32.totalorder %s22, 1
      %p53 = por %p51, %p52
      %p54 = scmp.ne.s32.totalorder %s46, %s49
      %p55 = scmp.eq.s32.totalorder %s22, 0
      %p56 = por %p54, %p55
      %p57 = scmp.ne.s32.totalorder %s46, %s49
      %p58 = scmp.eq.s32.totalorder %s27, 1
      %p59 = por %p57, %p58
      %p60 = scmp.ne.s32.totalorder %s49, %s50
      %p61 = scmp.eq.s32.totalorder %s27, 0
      %p62 = por %p60, %p61
      %p63 = scmp.ne.s32.totalorder %s49, %s50
      %p64 = scmp.eq.s32.totalorder %s28, 1
      %p65 = por %p63, %p64
      %p67 = scmp.ne.s32.totalorder %s50, %s66
      %p68 = scmp.eq.s32.totalorder %s28, 0
      %p69 = por %p67, %p68
      %s70 = ssub.s32 %s30, %s37
      %p71 = scmp.eq.s32.totalorder %s70, 0
      %s73 = sadd.s32 %s72, 1
      %s74 = scalar_select %p71, %s72, %s73
      %p77 = pneg %p71
      %p78 = scmp.eq.s32.totalorder %s22, 1
      %p79 = por %p77, %p78
      %p80 = scmp.ne.s32.totalorder %s72, %s75
      %p81 = scmp.eq.s32.totalorder %s22, 0
      %p82 = por %p80, %p81
      %p83 = scmp.ne.s32.totalorder %s72, %s75
      %p84 = scmp.eq.s32.totalorder %s27, 1
      %p85 = por %p83, %p84
      %p86 = scmp.ne.s32.totalorder %s75, %s76
      %p87 = scmp.eq.s32.totalorder %s27, 0
      %p88 = por %p86, %p87
      %p89 = scmp.ne.s32.totalorder %s75, %s76
      %p90 = scmp.eq.s32.totalorder %s28, 1
      %p91 = por %p89, %p90
      %p93 = scmp.ne.s32.totalorder %s76, %s92
      %p94 = scmp.eq.s32.totalorder %s28, 0
      %p95 = por %p93, %p94
      %s97 = sadd.s32 %s96, 1
      %p100 = scmp.eq.s32.totalorder %s22, 1
      %p101 = scmp.ne.s32.totalorder %s96, %s98
      %p102 = scmp.eq.s32.totalorder %s22, 0
      %p103 = por %p101, %p102
      %p104 = scmp.ne.s32.totalorder %s96, %s98
      %p105 = scmp.eq.s32.totalorder %s27, 1
      %p106 = por %p104, %p105
      %p107 = scmp.ne.s32.totalorder %s98, %s99
      %p108 = scmp.eq.s32.totalorder %s27, 0
      %p109 = por %p107, %p108
      %p110 = scmp.ne.s32.totalorder %s98, %s99
      %p111 = scmp.eq.s32.totalorder %s28, 1
      %p112 = por %p110, %p111
      %p114 = scmp.ne.s32.totalorder %s99, %s113
      %p115 = scmp.eq.s32.totalorder %s28, 0
      %p116 = por %p114, %p115
      %s118 = sadd.s32 %s117, 1
      %p121 = scmp.eq.s32.totalorder %s22, 1
      %p122 = scmp.ne.s32.totalorder %s117, %s119
      %p123 = scmp.eq.s32.totalorder %s22, 0
      %p124 = por %p122, %p123
      %p125 = scmp.ne.s32.totalorder %s117, %s119
      %p126 = scmp.eq.s32.totalorder %s27, 1
      %p127 = por %p125, %p126
      %p128 = scmp.ne.s32.totalorder %s119, %s120
      %p129 = scmp.eq.s32.totalorder %s27, 0
      %p130 = por %p128, %p129
      %p131 = scmp.ne.s32.totalorder %s119, %s120
      %p132 = scmp.eq.s32.totalorder %s28, 1
      %p133 = por %p131, %p132
      %p135 = scmp.ne.s32.totalorder %s120, %s134
      %p136 = scmp.eq.s32.totalorder %s28, 0
      %p137 = por %p135, %p136
      %s139 = sadd.s32 %s138, 1
      %p142 = scmp.eq.s32.totalorder %s22, 1
      %p143 = scmp.ne.s32.totalorder %s138, %s140
      %p144 = scmp.eq.s32.totalorder %s22, 0
      %p145 = por %p143, %p144
      %p146 = scmp.ne.s32.totalorder %s138, %s140
      %p147 = scmp.eq.s32.totalorder %s27, 1
      %p148 = por %p146, %p147
      %p149 = scmp.ne.s32.totalorder %s140, %s141
      %p150 = scmp.eq.s32.totalorder %s27, 0
      %p151 = por %p149, %p150
      %p152 = scmp.ne.s32.totalorder %s140, %s141
      %p153 = scmp.eq.s32.totalorder %s28, 1
      %p154 = por %p152, %p153
      %p156 = scmp.ne.s32.totalorder %s141, %s155
      %p157 = scmp.eq.s32.totalorder %s28, 0
      %p158 = por %p156, %p157
      %s160 = sadd.s32 %s159, 1
      %p163 = scmp.eq.s32.totalorder %s22, 1
      %p164 = scmp.ne.s32.totalorder %s159, %s161
      %p165 = scmp.eq.s32.totalorder %s22, 0
      %p166 = por %p164, %p165
      %p167 = scmp.ne.s32.totalorder %s159, %s161
      %p168 = scmp.eq.s32.totalorder %s27, 1
      %p169 = por %p167, %p168
      %p170 = scmp.ne.s32.totalorder %s161, %s162
      %p171 = scmp.eq.s32.totalorder %s27, 0
      %p172 = por %p170, %p171
      %p173 = scmp.ne.s32.totalorder %s161, %s162
      %p174 = scmp.eq.s32.totalorder %s28, 1
      %p175 = por %p173, %p174
      %p177 = scmp.ne.s32.totalorder %s162, %s176
      %p178 = scmp.eq.s32.totalorder %s28, 0
      %p179 = por %p177, %p178
      %s181 = sadd.s32 %s180, 1
      %p184 = scmp.eq.s32.totalorder %s22, 1
      %p185 = scmp.ne.s32.totalorder %s180, %s182
      %p186 = scmp.eq.s32.totalorder %s22, 0
      %p187 = por %p185, %p186
      %p188 = scmp.ne.s32.totalorder %s180, %s182
      %p189 = scmp.eq.s32.totalorder %s27, 1
      %p190 = por %p188, %p189
      %p191 = scmp.ne.s32.totalorder %s182, %s183
      %p192 = scmp.eq.s32.totalorder %s27, 0
      %p193 = por %p191, %p192
      %p194 = scmp.ne.s32.totalorder %s182, %s183
      %p195 = scmp.eq.s32.totalorder %s28, 1
      %p196 = por %p194, %p195
      %p198 = scmp.ne.s32.totalorder %s183, %s197
      %p199 = scmp.eq.s32.totalorder %s28, 0
      %p200 = por %p198, %p199
      %s201 = ssub.s32 %s29, %s41
      %p202 = scmp.eq.s32.totalorder %s201, 0
      %s204 = sadd.s32 %s203, 1
      %s205 = scalar_select %p202, %s203, %s204
      %p208 = pneg %p202
      %p209 = scmp.eq.s32.totalorder %s22, 1
      %p210 = por %p208, %p209
      %p211 = scmp.ne.s32.totalorder %s203, %s206
      %p212 = scmp.eq.s32.totalorder %s22, 0
      %p213 = por %p211, %p212
      %p214 = scmp.ne.s32.totalorder %s203, %s206
      %p215 = scmp.eq.s32.totalorder %s27, 1
      %p216 = por %p214, %p215
      %p217 = scmp.ne.s32.totalorder %s206, %s207
      %p218 = scmp.eq.s32.totalorder %s27, 0
      %p219 = por %p217, %p218
      %p220 = scmp.ne.s32.totalorder %s206, %s207
      %p221 = scmp.eq.s32.totalorder %s28, 1
      %p222 = por %p220, %p221
      %p224 = scmp.ne.s32.totalorder %s207, %s223
      %p225 = scmp.eq.s32.totalorder %s28, 0
      %p226 = por %p224, %p225
      %p227 = scmp.le.s32.totalorder 1, %s22
      %p228 = scmp.lt.s32.totalorder %s22, 3
      %p229 = pnand %p227, %p228
      %p230 = pneg %p229
      // Predicated region
      $region9: #{tpu_custom_call.1} parent=5 // pred_check
        _
      $region10: #{tpu_custom_call.1} parent=5 // pred_check_branch
        %232 = sbr.rel (%p229) target = $region12
      $region11: #{tpu_custom_call.1} parent=5 // pred_region
        %s233 = ssub.s32 %s22, 1
        // Predicated region
        $region13: #{tpu_custom_call.1} parent=11 // pred_check
          %p234 = pneg %p88
        $region14: #{tpu_custom_call.1} parent=11 // pred_check_branch
          %236 = sbr.rel (%p234) target = $region16
        $region15: #{tpu_custom_call.1} parent=11 // pred_region
          %s237 = smul.u32 32, %s32
          %239 = vsyncadd [#allocation7], 0
          %s240 = smul.addr %s237, 8
          %s241 = scalar_lea.hbm %s1, %s240
          %s242 = sshll.u32 %s241, 4
          %s243 = int_to_ptr.hbm [resolvable:$true] %s242
          %s244 = sshll.u32 [#allocation6], 4
          %s245 = int_to_ptr.vmem [resolvable:$true] %s244
          %250 = dma.hbm_to_vmem [thread:$0]  %s243, 4096, %s245, [#allocation7], 128, 128, 8
        $region16: #{tpu_custom_call.1} parent=11 // pred_fallthru
          _
        // Predicated region
        $region17: #{tpu_custom_call.1} parent=11 // pred_check
          %p251 = pneg %p109
        $region18: #{tpu_custom_call.1} parent=11 // pred_check_branch
          %253 = sbr.rel (%p251) target = $region20
        $region19: #{tpu_custom_call.1} parent=11 // pred_region
          %255 = vsyncadd [#allocation7], 0
          %s256 = sshll.u32 %s2, 4
          %s257 = int_to_ptr.hbm [resolvable:$true] %s256
          %s258 = sshll.u32 [#allocation8], 4
          %s259 = int_to_ptr.vmem [resolvable:$true] %s258
          %264 = dma.hbm_to_vmem [thread:$0]  %s257, 2048, %s259, [#allocation7], 128, 128, 8
        $region20: #{tpu_custom_call.1} parent=11 // pred_fallthru
          _
        // Predicated region
        $region21: #{tpu_custom_call.1} parent=11 // pred_check
          %p265 = pneg %p130
        $region22: #{tpu_custom_call.1} parent=11 // pred_check_branch
          %267 = sbr.rel (%p265) target = $region24
        $region23: #{tpu_custom_call.1} parent=11 // pred_region
          %269 = vsyncadd [#allocation10], 0
          %s270 = sshll.u32 %s3, 4
          %s271 = int_to_ptr.hbm [resolvable:$true] %s270
          %s272 = sshll.u32 [#allocation9], 4
          %s273 = int_to_ptr.vmem [resolvable:$true] %s272
          %278 = dma.hbm_to_vmem [thread:$0]  %s271, 8192, %s273, [#allocation10], 512, 512, 32
        $region24: #{tpu_custom_call.1} parent=11 // pred_fallthru
          _
        // Predicated region
        $region25: #{tpu_custom_call.1} parent=11 // pred_check
          %p279 = pneg %p151
        $region26: #{tpu_custom_call.1} parent=11 // pred_check_branch
          %281 = sbr.rel (%p279) target = $region28
        $region27: #{tpu_custom_call.1} parent=11 // pred_region
          %283 = vsyncadd [#allocation10], 0
          %s284 = sshll.u32 %s4, 4
          %s285 = int_to_ptr.hbm [resolvable:$true] %s284
          %s286 = sshll.u32 [#allocation11], 4
          %s287 = int_to_ptr.vmem [resolvable:$true] %s286
          %292 = dma.hbm_to_vmem [thread:$0]  %s285, 8192, %s287, [#allocation10], 128, 128, 8
        $region28: #{tpu_custom_call.1} parent=11 // pred_fallthru
          _
        // Predicated region
        $region29: #{tpu_custom_call.1} parent=11 // pred_check
          %p293 = pneg %p172
        $region30: #{tpu_custom_call.1} parent=11 // pred_check_branch
          %295 = sbr.rel (%p293) target = $region32
        $region31: #{tpu_custom_call.1} parent=11 // pred_region
          %297 = vsyncadd [#allocation13], 0
          %s299 = sshll.u32 %s5, 4
          %s300 = int_to_ptr.hbm [resolvable:$true] %s299
          %s301 = sshll.u32 [#allocation12], 4
          %s302 = int_to_ptr.vmem [resolvable:$true] %s301
          %304 = dma.hbm_to_vmem [thread:$0]  %s300, 128, %s302, [#allocation13]
        $region32: #{tpu_custom_call.1} parent=11 // pred_fallthru
          _
        // Predicated region
        $region33: #{tpu_custom_call.1} parent=11 // pred_check
          %p305 = pneg %p193
        $region34: #{tpu_custom_call.1} parent=11 // pred_check_branch
          %307 = sbr.rel (%p305) target = $region36
        $region35: #{tpu_custom_call.1} parent=11 // pred_region
          _
        $region36: #{tpu_custom_call.1} parent=11 // pred_fallthru
          _
      $region12: #{tpu_custom_call.1} parent=5 // pred_fallthru
        _
      %p308 = scmp.lt.s32.totalorder %s22, 2
      // Predicated region
      $region37: #{tpu_custom_call.1} parent=5 // pred_check
        %p309 = pneg %p308
      $region38: #{tpu_custom_call.1} parent=5 // pred_check_branch
        %311 = sbr.rel (%p309) target = $region40
      $region39: #{tpu_custom_call.1} parent=5 // pred_region
        // Predicated region
        $region41: #{tpu_custom_call.1} parent=39 // pred_check
          %p312 = pneg %p56
        $region42: #{tpu_custom_call.1} parent=39 // pred_check_branch
          %314 = sbr.rel (%p312) target = $region44
        $region43: #{tpu_custom_call.1} parent=39 // pred_region
          %s315 = sand.u32 %s46, 1
          %s316 = scalar_lea.sflag [#allocation4], %s315
          %s317 = sand.u32 %s46, 1
          %s318 = smul.addr %s317, 16
          %s319 = scalar_lea.vmem [#allocation3], %s318
          %s320 = smul.u32 2, %s30
          %322 = vsyncadd %s316, 0
          %s323 = smul.addr %s29, 2
          %s324 = sadd.s32 %s320, %s323
          %s325 = smul.addr %s324, 8
          %s326 = scalar_lea.hbm %s0, %s325
          %s328 = sshll.u32 %s326, 4
          %s329 = int_to_ptr.hbm [resolvable:$true] %s328
          %s330 = sshll.u32 %s319, 4
          %s331 = int_to_ptr.vmem [resolvable:$true] %s330
          %333 = dma.hbm_to_vmem [thread:$0]  %s329, 256, %s331, %s316
        $region44: #{tpu_custom_call.1} parent=39 // pred_fallthru
          _
      $region40: #{tpu_custom_call.1} parent=5 // pred_fallthru
        _
      %p334 = scmp.le.s32.totalorder 1, %s22
      %p335 = scmp.lt.s32.totalorder %s22, 3
      %p336 = pnand %p334, %p335
      %p337 = pneg %p336
      // Predicated region
      $region45: #{tpu_custom_call.1} parent=5 // pred_check
        _
      $region46: #{tpu_custom_call.1} parent=5 // pred_check_branch
        %339 = sbr.rel (%p336) target = $region48
      $region47: #{tpu_custom_call.1} parent=5 // pred_region
        %s340 = ssub.s32 %s22, 1
        %s341 = sand.u32 %s49, 1
        %s342 = scalar_lea.sflag [#allocation4], %s341
        %s343 = sand.u32 %s49, 1
        %s344 = smul.addr %s343, 16
        %s345 = scalar_lea.vmem [#allocation3], %s344
        // Predicated region
        $region49: #{tpu_custom_call.1} parent=47 // pred_check
          %p346 = pneg %p62
        $region50: #{tpu_custom_call.1} parent=47 // pred_check_branch
          %348 = sbr.rel (%p346) target = $region52
        $region51: #{tpu_custom_call.1} parent=47 // pred_region
          %350 = dma.done %s342, 256
        $region52: #{tpu_custom_call.1} parent=47 // pred_fallthru
          _
        // Predicated region
        $region53: #{tpu_custom_call.1} parent=47 // pred_check
          %p351 = pneg %p88
        $region54: #{tpu_custom_call.1} parent=47 // pred_check_branch
          %353 = sbr.rel (%p351) target = $region56
        $region55: #{tpu_custom_call.1} parent=47 // pred_region
          %355 = dma.done [#allocation7], 4096
        $region56: #{tpu_custom_call.1} parent=47 // pred_fallthru
          _
        // Predicated region
        $region57: #{tpu_custom_call.1} parent=47 // pred_check
          %p356 = pneg %p109
        $region58: #{tpu_custom_call.1} parent=47 // pred_check_branch
          %358 = sbr.rel (%p356) target = $region60
        $region59: #{tpu_custom_call.1} parent=47 // pred_region
          %360 = dma.done [#allocation7], 2048
        $region60: #{tpu_custom_call.1} parent=47 // pred_fallthru
          _
        // Predicated region
        $region61: #{tpu_custom_call.1} parent=47 // pred_check
          %p361 = pneg %p130
        $region62: #{tpu_custom_call.1} parent=47 // pred_check_branch
          %363 = sbr.rel (%p361) target = $region64
        $region63: #{tpu_custom_call.1} parent=47 // pred_region
          %365 = dma.done [#allocation10], 8192
        $region64: #{tpu_custom_call.1} parent=47 // pred_fallthru
          _
        // Predicated region
        $region65: #{tpu_custom_call.1} parent=47 // pred_check
          %p366 = pneg %p151
        $region66: #{tpu_custom_call.1} parent=47 // pred_check_branch
          %368 = sbr.rel (%p366) target = $region68
        $region67: #{tpu_custom_call.1} parent=47 // pred_region
          %370 = dma.done [#allocation10], 8192
        $region68: #{tpu_custom_call.1} parent=47 // pred_fallthru
          _
        // Predicated region
        $region69: #{tpu_custom_call.1} parent=47 // pred_check
          %p371 = pneg %p172
        $region70: #{tpu_custom_call.1} parent=47 // pred_check_branch
          %373 = sbr.rel (%p371) target = $region72
        $region71: #{tpu_custom_call.1} parent=47 // pred_region
          %375 = dma.done [#allocation13], 128
        $region72: #{tpu_custom_call.1} parent=47 // pred_fallthru
          _
        %s376 = sand.u32 %s49, 1
        %s377 = scalar_lea.sflag [#allocation4], %s376
        %s378 = sand.u32 %s49, 1
        %s379 = smul.addr %s378, 16
        %s380 = scalar_lea.vmem [#allocation3], %s379
        %p381 = pneg %p62
        %p382 = pneg %p59
        %p383 = pneg %p88
        %p384 = pneg %p85
        %p385 = pneg %p109
        %p386 = pneg %p106
        %p387 = pneg %p130
        %p388 = pneg %p127
        %p389 = pneg %p151
        %p390 = pneg %p148
        %p391 = pneg %p172
        %p392 = pneg %p169
        %p393 = pneg %p193
        %p394 = pneg %p190
        %p395 = pneg %p219
        %p396 = pneg %p216
        %s397 = sand.u32 %s206, 1
        %s398 = scalar_lea.sflag [#allocation5], %s397
        %s399 = sand.u32 %s206, 1
        %s400 = smul.addr %s399, 8
        %s401 = scalar_lea.vmem [#allocation14], %s400
        %s402 = smul.u32 2, %s32
        %s403 = smul.u32 32, %s32
        %p404 = scmp.eq.s32.totalorder %s32, 0
        // Predicated region
        $region73: #{tpu_custom_call.1} parent=47 // pred_check
          %p405 = pneg %p404
        $region74: #{tpu_custom_call.1} parent=47 // pred_check_branch
          %407 = sbr.rel (%p405) target = $region76
        $region75: #{tpu_custom_call.1} parent=47 // pred_region
          %408 = vst [vmem:[#allocation2] sm:$0xff] 0.0
        $region76: #{tpu_custom_call.1} parent=47 // pred_fallthru
          _
        %v409 = vld [vmem:[#allocation2] sm:$0xff]
        %v410 = vld [vmem:[%s345] sm:$0xff]
        %v411 = vld [vmem:[%s345 + $0x8] sm:$0xff]
        %v412 = vld [vmem:[#allocation6] sm:$0xff]
        %v413 = vld [vmem:[#allocation6 + $0x8] sm:$0xff]
        %v414 = vld [vmem:[#allocation6 + $0x10] sm:$0xff]
        %v415 = vld [vmem:[#allocation6 + $0x18] sm:$0xff]
        %v416 = vld [vmem:[#allocation6 + $0x20] sm:$0xff]
        %v417 = vld [vmem:[#allocation6 + $0x28] sm:$0xff]
        %v418 = vld [vmem:[#allocation6 + $0x30] sm:$0xff]
        %v419 = vld [vmem:[#allocation6 + $0x38] sm:$0xff]
        %v420 = vld [vmem:[#allocation6 + $0x40] sm:$0xff]
        %v421 = vld [vmem:[#allocation6 + $0x48] sm:$0xff]
        %v422 = vld [vmem:[#allocation6 + $0x50] sm:$0xff]
        %v423 = vld [vmem:[#allocation6 + $0x58] sm:$0xff]
        %v424 = vld [vmem:[#allocation6 + $0x60] sm:$0xff]
        %v425 = vld [vmem:[#allocation6 + $0x68] sm:$0xff]
        %v426 = vld [vmem:[#allocation6 + $0x70] sm:$0xff]
        %v427 = vld [vmem:[#allocation6 + $0x78] sm:$0xff]
        %v428 = vld [vmem:[#allocation6 + $0x80] sm:$0xff]
        %v429 = vld [vmem:[#allocation6 + $0x88] sm:$0xff]
        %v430 = vld [vmem:[#allocation6 + $0x90] sm:$0xff]
        %v431 = vld [vmem:[#allocation6 + $0x98] sm:$0xff]
        %v432 = vld [vmem:[#allocation6 + $0xa0] sm:$0xff]
        %v433 = vld [vmem:[#allocation6 + $0xa8] sm:$0xff]
        %v434 = vld [vmem:[#allocation6 + $0xb0] sm:$0xff]
        %v435 = vld [vmem:[#allocation6 + $0xb8] sm:$0xff]
        %v436 = vld [vmem:[#allocation6 + $0xc0] sm:$0xff]
        %v437 = vld [vmem:[#allocation6 + $0xc8] sm:$0xff]
        %v438 = vld [vmem:[#allocation6 + $0xd0] sm:$0xff]
        %v439 = vld [vmem:[#allocation6 + $0xd8] sm:$0xff]
        %v440 = vld [vmem:[#allocation6 + $0xe0] sm:$0xff]
        %v441 = vld [vmem:[#allocation6 + $0xe8] sm:$0xff]
        %v442 = vld [vmem:[#allocation6 + $0xf0] sm:$0xff]
        %v443 = vld [vmem:[#allocation6 + $0xf8] sm:$0xff]
        %444 = vmatpush.msra.mxu0 %v427
        %445 = vmatpush.msra.mxu0 %v426
        %446 = vmatpush.msra.mxu0 %v425
        %447 = vmatpush.msra.mxu0 %v424
        %448 = vmatpush.msra.mxu0 %v423
        %449 = vmatpush.msra.mxu0 %v422
        %450 = vmatpush.msra.mxu0 %v421
        %451 = vmatpush.msra.mxu0 %v420
        %452 = vmatpush.msra.mxu0 %v419
        %453 = vmatpush.msra.mxu0 %v418
        %454 = vmatpush.msra.mxu0 %v417
        %455 = vmatpush.msra.mxu0 %v416
        %456 = vmatpush.msra.mxu0 %v415
        %457 = vmatpush.msra.mxu0 %v414
        %458 = vmatpush.msra.mxu0 %v413
        %459 = vmatpush.msra.mxu0 %v412
        %460 = vmatmul.f32.gmra.mxu0 %v410
        %v461 = vpop.f32.mrf.mxu0
        %v462 = vadd.f32 0.0, %v461
        %463 = vdwg.mxu0
        %464 = vmatpush.msra.mxu0 %v443
        %465 = vmatpush.msra.mxu0 %v442
        %466 = vmatpush.msra.mxu0 %v441
        %467 = vmatpush.msra.mxu0 %v440
        %468 = vmatpush.msra.mxu0 %v439
        %469 = vmatpush.msra.mxu0 %v438
        %470 = vmatpush.msra.mxu0 %v437
        %471 = vmatpush.msra.mxu0 %v436
        %472 = vmatpush.msra.mxu0 %v435
        %473 = vmatpush.msra.mxu0 %v434
        %474 = vmatpush.msra.mxu0 %v433
        %475 = vmatpush.msra.mxu0 %v432
        %476 = vmatpush.msra.mxu0 %v431
        %477 = vmatpush.msra.mxu0 %v430
        %478 = vmatpush.msra.mxu0 %v429
        %479 = vmatpush.msra.mxu0 %v428
        %480 = vmatmul.f32.gmra.mxu0 %v411
        %v481 = vpop.f32.mrf.mxu0
        %v482 = vadd.f32 %v462, %v481
        %483 = vdwg.mxu0
        %v484 = vadd.f32 %v409, %v482
        %485 = vst [vmem:[#allocation2] sm:$0xff] %v484
        // Predicated region
        $region77: #{tpu_custom_call.1} parent=47 // pred_check
          %p486 = pneg %p404
        $region78: #{tpu_custom_call.1} parent=47 // pred_check_branch
          %488 = sbr.rel (%p486) target = $region80
        $region79: #{tpu_custom_call.1} parent=47 // pred_region
          %v489 = vld [vmem:[#allocation12] sm:$0x7f]
          %v490 = vld [vmem:[#allocation2] sm:$0xff]
          %v491 = vperm.slane %v489, 0
          %v492 = vadd.f32 %v490, %v491
          %vm493 = vcmp.ge.f32.partialorder %v492, 0.0
          %v494 = vmul.f32 %v492, 0.01
          %v495 = vsel %vm493, %v492, %v494
          %496 = vadd.xlane.f32.xlu0 %v495
          %v497 = vpop.xlane.xlu0 %496
          %v498 = vrcp.pop 128.0
          %v499 = vmul.f32 128.0, %v498
          %v500 = vsub.f32 1.0, %v499
          %v501 = vmul.f32 %v498, %v500
          %v502 = vadd.f32 %v498, %v501
          %vm503 = vweird.f32 %v498
          %v504 = vsel %vm503, %v498, %v502
          %v505 = vmul.f32 %v497, %v504
          %v506 = vsub.f32 %v495, %v505
          %v507 = vmul.f32 %v506, %v506
          %508 = vadd.xlane.f32.xlu0 %v507
          %v509 = vpop.xlane.xlu0 %508
          %v510 = vmul.f32 %v509, %v504
          %v511 = vadd.f32 %v510, 1e-05
          %v512 = vrsqrt.pop %v511
          %v513 = vmul.f32 %v512, %v511
          %v514 = vmul.f32 %v513, %v512
          %v515 = vmul.f32 0.5, %v514
          %v516 = vsub.f32 1.5, %v515
          %v517 = vmul.f32 %v512, %v516
          %vm518 = vweird.f32 %v511
          %vm519 = vweird.f32 %v512
          %vm520 = vmor %vm518, %vm519
          %v521 = vsel %vm520, %v512, %v517
          %v522 = vmul.f32 %v506, %v521
          %v523 = vperm.slane %v489, 1
          %v524 = vmul.f32 %v522, %v523
          %v525 = vperm.slane %v489, 2
          %v526 = vadd.f32 %v524, %v525
          %v527 = vld [vmem:[#allocation8] sm:$0xff]
          %v528 = vld [vmem:[#allocation8 + $0x8] sm:$0xff]
          %v529 = vld [vmem:[#allocation8 + $0x10] sm:$0xff]
          %v530 = vld [vmem:[#allocation8 + $0x18] sm:$0xff]
          %v531 = vld [vmem:[#allocation8 + $0x20] sm:$0xff]
          %v532 = vld [vmem:[#allocation8 + $0x28] sm:$0xff]
          %v533 = vld [vmem:[#allocation8 + $0x30] sm:$0xff]
          %v534 = vld [vmem:[#allocation8 + $0x38] sm:$0xff]
          %v535 = vld [vmem:[#allocation8 + $0x40] sm:$0xff]
          %v536 = vld [vmem:[#allocation8 + $0x48] sm:$0xff]
          %v537 = vld [vmem:[#allocation8 + $0x50] sm:$0xff]
          %v538 = vld [vmem:[#allocation8 + $0x58] sm:$0xff]
          %v539 = vld [vmem:[#allocation8 + $0x60] sm:$0xff]
          %v540 = vld [vmem:[#allocation8 + $0x68] sm:$0xff]
          %v541 = vld [vmem:[#allocation8 + $0x70] sm:$0xff]
          %v542 = vld [vmem:[#allocation8 + $0x78] sm:$0xff]
          %v543 = vperm.slane %v489, 3
          %544 = vmatpush.msra.mxu0 %v542
          %545 = vmatpush.msra.mxu0 %v541
          %546 = vmatpush.msra.mxu0 %v540
          %547 = vmatpush.msra.mxu0 %v539
          %548 = vmatpush.msra.mxu0 %v538
          %549 = vmatpush.msra.mxu0 %v537
          %550 = vmatpush.msra.mxu0 %v536
          %551 = vmatpush.msra.mxu0 %v535
          %552 = vmatpush.msra.mxu0 %v534
          %553 = vmatpush.msra.mxu0 %v533
          %554 = vmatpush.msra.mxu0 %v532
          %555 = vmatpush.msra.mxu0 %v531
          %556 = vmatpush.msra.mxu0 %v530
          %557 = vmatpush.msra.mxu0 %v529
          %558 = vmatpush.msra.mxu0 %v528
          %559 = vmatpush.msra.mxu0 %v527
          %560 = vmatmul.f32.gmra.mxu0 %v526
          %v561 = vpop.f32.mrf.mxu0
          %v562 = vadd.f32 %v543, %v561
          %563 = vdwg.mxu0
          %vm564 = vcmp.ge.f32.partialorder %v562, 0.0
          %v565 = vmul.f32 %v562, 0.01
          %v566 = vsel %vm564, %v562, %v565
          %567 = vadd.xlane.f32.xlu0 %v566
          %v568 = vpop.xlane.xlu0 %567
          %v569 = vmul.f32 %v568, %v504
          %v570 = vsub.f32 %v566, %v569
          %v571 = vmul.f32 %v570, %v570
          %572 = vadd.xlane.f32.xlu0 %v571
          %v573 = vpop.xlane.xlu0 %572
          %v574 = vmul.f32 %v573, %v504
          %v575 = vadd.f32 %v574, 1e-05
          %v576 = vrsqrt.pop %v575
          %v577 = vmul.f32 %v576, %v575
          %v578 = vmul.f32 %v577, %v576
          %v579 = vmul.f32 0.5, %v578
          %v580 = vsub.f32 1.5, %v579
          %v581 = vmul.f32 %v576, %v580
          %vm582 = vweird.f32 %v575
          %vm583 = vweird.f32 %v576
          %vm584 = vmor %vm582, %vm583
          %v585 = vsel %vm584, %v576, %v581
          %v586 = vmul.f32 %v570, %v585
          %v587 = vperm.slane %v489, 4
          %v588 = vmul.f32 %v586, %v587
          %v589 = vperm.slane %v489, 5
          %v590 = vadd.f32 %v588, %v589
          %v591 = vld [vmem:[#allocation9] sm:$0xff]
          %v592 = vld [vmem:[#allocation9 + $0x8] sm:$0xff]
          %v593 = vld [vmem:[#allocation9 + $0x10] sm:$0xff]
          %v594 = vld [vmem:[#allocation9 + $0x18] sm:$0xff]
          %v595 = vld [vmem:[#allocation9 + $0x20] sm:$0xff]
          %v596 = vld [vmem:[#allocation9 + $0x28] sm:$0xff]
          %v597 = vld [vmem:[#allocation9 + $0x30] sm:$0xff]
          %v598 = vld [vmem:[#allocation9 + $0x38] sm:$0xff]
          %v599 = vld [vmem:[#allocation9 + $0x40] sm:$0xff]
          %v600 = vld [vmem:[#allocation9 + $0x48] sm:$0xff]
          %v601 = vld [vmem:[#allocation9 + $0x50] sm:$0xff]
          %v602 = vld [vmem:[#allocation9 + $0x58] sm:$0xff]
          %v603 = vld [vmem:[#allocation9 + $0x60] sm:$0xff]
          %v604 = vld [vmem:[#allocation9 + $0x68] sm:$0xff]
          %v605 = vld [vmem:[#allocation9 + $0x70] sm:$0xff]
          %v606 = vld [vmem:[#allocation9 + $0x78] sm:$0xff]
          %v607 = vld [vmem:[#allocation9 + $0x80] sm:$0xff]
          %v608 = vld [vmem:[#allocation9 + $0x88] sm:$0xff]
          %v609 = vld [vmem:[#allocation9 + $0x90] sm:$0xff]
          %v610 = vld [vmem:[#allocation9 + $0x98] sm:$0xff]
          %v611 = vld [vmem:[#allocation9 + $0xa0] sm:$0xff]
          %v612 = vld [vmem:[#allocation9 + $0xa8] sm:$0xff]
          %v613 = vld [vmem:[#allocation9 + $0xb0] sm:$0xff]
          %v614 = vld [vmem:[#allocation9 + $0xb8] sm:$0xff]
          %v615 = vld [vmem:[#allocation9 + $0xc0] sm:$0xff]
          %v616 = vld [vmem:[#allocation9 + $0xc8] sm:$0xff]
          %v617 = vld [vmem:[#allocation9 + $0xd0] sm:$0xff]
          %v618 = vld [vmem:[#allocation9 + $0xd8] sm:$0xff]
          %v619 = vld [vmem:[#allocation9 + $0xe0] sm:$0xff]
          %v620 = vld [vmem:[#allocation9 + $0xe8] sm:$0xff]
          %v621 = vld [vmem:[#allocation9 + $0xf0] sm:$0xff]
          %v622 = vld [vmem:[#allocation9 + $0xf8] sm:$0xff]
          %v623 = vld [vmem:[#allocation9 + $0x100] sm:$0xff]
          %v624 = vld [vmem:[#allocation9 + $0x108] sm:$0xff]
          %v625 = vld [vmem:[#allocation9 + $0x110] sm:$0xff]
          %v626 = vld [vmem:[#allocation9 + $0x118] sm:$0xff]
          %v627 = vld [vmem:[#allocation9 + $0x120] sm:$0xff]
          %v628 = vld [vmem:[#allocation9 + $0x128] sm:$0xff]
          %v629 = vld [vmem:[#allocation9 + $0x130] sm:$0xff]
          %v630 = vld [vmem:[#allocation9 + $0x138] sm:$0xff]
          %v631 = vld [vmem:[#allocation9 + $0x140] sm:$0xff]
          %v632 = vld [vmem:[#allocation9 + $0x148] sm:$0xff]
          %v633 = vld [vmem:[#allocation9 + $0x150] sm:$0xff]
          %v634 = vld [vmem:[#allocation9 + $0x158] sm:$0xff]
          %v635 = vld [vmem:[#allocation9 + $0x160] sm:$0xff]
          %v636 = vld [vmem:[#allocation9 + $0x168] sm:$0xff]
          %v637 = vld [vmem:[#allocation9 + $0x170] sm:$0xff]
          %v638 = vld [vmem:[#allocation9 + $0x178] sm:$0xff]
          %v639 = vld [vmem:[#allocation9 + $0x180] sm:$0xff]
          %v640 = vld [vmem:[#allocation9 + $0x188] sm:$0xff]
          %v641 = vld [vmem:[#allocation9 + $0x190] sm:$0xff]
          %v642 = vld [vmem:[#allocation9 + $0x198] sm:$0xff]
          %v643 = vld [vmem:[#allocation9 + $0x1a0] sm:$0xff]
          %v644 = vld [vmem:[#allocation9 + $0x1a8] sm:$0xff]
          %v645 = vld [vmem:[#allocation9 + $0x1b0] sm:$0xff]
          %v646 = vld [vmem:[#allocation9 + $0x1b8] sm:$0xff]
          %v647 = vld [vmem:[#allocation9 + $0x1c0] sm:$0xff]
          %v648 = vld [vmem:[#allocation9 + $0x1c8] sm:$0xff]
          %v649 = vld [vmem:[#allocation9 + $0x1d0] sm:$0xff]
          %v650 = vld [vmem:[#allocation9 + $0x1d8] sm:$0xff]
          %v651 = vld [vmem:[#allocation9 + $0x1e0] sm:$0xff]
          %v652 = vld [vmem:[#allocation9 + $0x1e8] sm:$0xff]
          %v653 = vld [vmem:[#allocation9 + $0x1f0] sm:$0xff]
          %v654 = vld [vmem:[#allocation9 + $0x1f8] sm:$0xff]
          %v655 = vld [vmem:[%s6] sm:$0xf]
          %v657 = vperm.slane %v655, 0
          %v658 = vperm.slane %v655, 1
          %v659 = vperm.slane %v655, 2
          %v660 = vperm.slane %v655, 3
          %665 = vmatpush.msra.mxu0 %v651
          %666 = vmatpush.msra.mxu0 %v647
          %667 = vmatpush.msra.mxu0 %v643
          %668 = vmatpush.msra.mxu0 %v639
          %669 = vmatpush.msra.mxu0 %v635
          %670 = vmatpush.msra.mxu0 %v631
          %671 = vmatpush.msra.mxu0 %v627
          %672 = vmatpush.msra.mxu0 %v623
          %673 = vmatpush.msra.mxu0 %v619
          %674 = vmatpush.msra.mxu0 %v615
          %675 = vmatpush.msra.mxu0 %v611
          %676 = vmatpush.msra.mxu0 %v607
          %677 = vmatpush.msra.mxu0 %v603
          %678 = vmatpush.msra.mxu0 %v599
          %679 = vmatpush.msra.mxu0 %v595
          %680 = vmatpush.msra.mxu0 %v591
          %681 = vmatmul.f32.gmra.mxu0 %v590
          %v682 = vpop.f32.mrf.mxu0
          %v683 = vadd.f32 %v657, %v682
          %684 = vdwg.mxu0
          %685 = vmatpush.msra.mxu0 %v652
          %686 = vmatpush.msra.mxu0 %v648
          %687 = vmatpush.msra.mxu0 %v644
          %688 = vmatpush.msra.mxu0 %v640
          %689 = vmatpush.msra.mxu0 %v636
          %690 = vmatpush.msra.mxu0 %v632
          %691 = vmatpush.msra.mxu0 %v628
          %692 = vmatpush.msra.mxu0 %v624
          %693 = vmatpush.msra.mxu0 %v620
          %694 = vmatpush.msra.mxu0 %v616
          %695 = vmatpush.msra.mxu0 %v612
          %696 = vmatpush.msra.mxu0 %v608
          %697 = vmatpush.msra.mxu0 %v604
          %698 = vmatpush.msra.mxu0 %v600
          %699 = vmatpush.msra.mxu0 %v596
          %700 = vmatpush.msra.mxu0 %v592
          %701 = vmatmul.f32.gmra.mxu0 %v590
          %v702 = vpop.f32.mrf.mxu0
          %v703 = vadd.f32 %v658, %v702
          %704 = vdwg.mxu0
          %705 = vmatpush.msra.mxu0 %v653
          %706 = vmatpush.msra.mxu0 %v649
          %707 = vmatpush.msra.mxu0 %v645
          %708 = vmatpush.msra.mxu0 %v641
          %709 = vmatpush.msra.mxu0 %v637
          %710 = vmatpush.msra.mxu0 %v633
          %711 = vmatpush.msra.mxu0 %v629
          %712 = vmatpush.msra.mxu0 %v625
          %713 = vmatpush.msra.mxu0 %v621
          %714 = vmatpush.msra.mxu0 %v617
          %715 = vmatpush.msra.mxu0 %v613
          %716 = vmatpush.msra.mxu0 %v609
          %717 = vmatpush.msra.mxu0 %v605
          %718 = vmatpush.msra.mxu0 %v601
          %719 = vmatpush.msra.mxu0 %v597
          %720 = vmatpush.msra.mxu0 %v593
          %721 = vmatmul.f32.gmra.mxu0 %v590
          %v722 = vpop.f32.mrf.mxu0
          %v723 = vadd.f32 %v659, %v722
          %724 = vdwg.mxu0
          %725 = vmatpush.msra.mxu0 %v654
          %726 = vmatpush.msra.mxu0 %v650
          %727 = vmatpush.msra.mxu0 %v646
          %728 = vmatpush.msra.mxu0 %v642
          %729 = vmatpush.msra.mxu0 %v638
          %730 = vmatpush.msra.mxu0 %v634
          %731 = vmatpush.msra.mxu0 %v630
          %732 = vmatpush.msra.mxu0 %v626
          %733 = vmatpush.msra.mxu0 %v622
          %734 = vmatpush.msra.mxu0 %v618
          %735 = vmatpush.msra.mxu0 %v614
          %736 = vmatpush.msra.mxu0 %v610
          %737 = vmatpush.msra.mxu0 %v606
          %738 = vmatpush.msra.mxu0 %v602
          %739 = vmatpush.msra.mxu0 %v598
          %740 = vmatpush.msra.mxu0 %v594
          %741 = vmatmul.f32.gmra.mxu0 %v590
          %v742 = vpop.f32.mrf.mxu0
          %v743 = vadd.f32 %v660, %v742
          %744 = vdwg.mxu0
          %vm745 = vcmp.ge.f32.partialorder %v683, 0.0
          %vm746 = vcmp.ge.f32.partialorder %v703, 0.0
          %vm747 = vcmp.ge.f32.partialorder %v723, 0.0
          %vm748 = vcmp.ge.f32.partialorder %v743, 0.0
          %v749 = vmul.f32 %v683, 0.01
          %v750 = vmul.f32 %v703, 0.01
          %v751 = vmul.f32 %v723, 0.01
          %v752 = vmul.f32 %v743, 0.01
          %v753 = vsel %vm745, %v683, %v749
          %v754 = vsel %vm746, %v703, %v750
          %v755 = vsel %vm747, %v723, %v751
          %v756 = vsel %vm748, %v743, %v752
          %v757 = vld [vmem:[#allocation11] sm:$0xff]
          %v758 = vld [vmem:[#allocation11 + $0x8] sm:$0xff]
          %v759 = vld [vmem:[#allocation11 + $0x10] sm:$0xff]
          %v760 = vld [vmem:[#allocation11 + $0x18] sm:$0xff]
          %v761 = vld [vmem:[#allocation11 + $0x20] sm:$0xff]
          %v762 = vld [vmem:[#allocation11 + $0x28] sm:$0xff]
          %v763 = vld [vmem:[#allocation11 + $0x30] sm:$0xff]
          %v764 = vld [vmem:[#allocation11 + $0x38] sm:$0xff]
          %v765 = vld [vmem:[#allocation11 + $0x40] sm:$0xff]
          %v766 = vld [vmem:[#allocation11 + $0x48] sm:$0xff]
          %v767 = vld [vmem:[#allocation11 + $0x50] sm:$0xff]
          %v768 = vld [vmem:[#allocation11 + $0x58] sm:$0xff]
          %v769 = vld [vmem:[#allocation11 + $0x60] sm:$0xff]
          %v770 = vld [vmem:[#allocation11 + $0x68] sm:$0xff]
          %v771 = vld [vmem:[#allocation11 + $0x70] sm:$0xff]
          %v772 = vld [vmem:[#allocation11 + $0x78] sm:$0xff]
          %v773 = vld [vmem:[#allocation11 + $0x80] sm:$0xff]
          %v774 = vld [vmem:[#allocation11 + $0x88] sm:$0xff]
          %v775 = vld [vmem:[#allocation11 + $0x90] sm:$0xff]
          %v776 = vld [vmem:[#allocation11 + $0x98] sm:$0xff]
          %v777 = vld [vmem:[#allocation11 + $0xa0] sm:$0xff]
          %v778 = vld [vmem:[#allocation11 + $0xa8] sm:$0xff]
          %v779 = vld [vmem:[#allocation11 + $0xb0] sm:$0xff]
          %v780 = vld [vmem:[#allocation11 + $0xb8] sm:$0xff]
          %v781 = vld [vmem:[#allocation11 + $0xc0] sm:$0xff]
          %v782 = vld [vmem:[#allocation11 + $0xc8] sm:$0xff]
          %v783 = vld [vmem:[#allocation11 + $0xd0] sm:$0xff]
          %v784 = vld [vmem:[#allocation11 + $0xd8] sm:$0xff]
          %v785 = vld [vmem:[#allocation11 + $0xe0] sm:$0xff]
          %v786 = vld [vmem:[#allocation11 + $0xe8] sm:$0xff]
          %v787 = vld [vmem:[#allocation11 + $0xf0] sm:$0xff]
          %v788 = vld [vmem:[#allocation11 + $0xf8] sm:$0xff]
          %v789 = vld [vmem:[#allocation11 + $0x100] sm:$0xff]
          %v790 = vld [vmem:[#allocation11 + $0x108] sm:$0xff]
          %v791 = vld [vmem:[#allocation11 + $0x110] sm:$0xff]
          %v792 = vld [vmem:[#allocation11 + $0x118] sm:$0xff]
          %v793 = vld [vmem:[#allocation11 + $0x120] sm:$0xff]
          %v794 = vld [vmem:[#allocation11 + $0x128] sm:$0xff]
          %v795 = vld [vmem:[#allocation11 + $0x130] sm:$0xff]
          %v796 = vld [vmem:[#allocation11 + $0x138] sm:$0xff]
          %v797 = vld [vmem:[#allocation11 + $0x140] sm:$0xff]
          %v798 = vld [vmem:[#allocation11 + $0x148] sm:$0xff]
          %v799 = vld [vmem:[#allocation11 + $0x150] sm:$0xff]
          %v800 = vld [vmem:[#allocation11 + $0x158] sm:$0xff]
          %v801 = vld [vmem:[#allocation11 + $0x160] sm:$0xff]
          %v802 = vld [vmem:[#allocation11 + $0x168] sm:$0xff]
          %v803 = vld [vmem:[#allocation11 + $0x170] sm:$0xff]
          %v804 = vld [vmem:[#allocation11 + $0x178] sm:$0xff]
          %v805 = vld [vmem:[#allocation11 + $0x180] sm:$0xff]
          %v806 = vld [vmem:[#allocation11 + $0x188] sm:$0xff]
          %v807 = vld [vmem:[#allocation11 + $0x190] sm:$0xff]
          %v808 = vld [vmem:[#allocation11 + $0x198] sm:$0xff]
          %v809 = vld [vmem:[#allocation11 + $0x1a0] sm:$0xff]
          %v810 = vld [vmem:[#allocation11 + $0x1a8] sm:$0xff]
          %v811 = vld [vmem:[#allocation11 + $0x1b0] sm:$0xff]
          %v812 = vld [vmem:[#allocation11 + $0x1b8] sm:$0xff]
          %v813 = vld [vmem:[#allocation11 + $0x1c0] sm:$0xff]
          %v814 = vld [vmem:[#allocation11 + $0x1c8] sm:$0xff]
          %v815 = vld [vmem:[#allocation11 + $0x1d0] sm:$0xff]
          %v816 = vld [vmem:[#allocation11 + $0x1d8] sm:$0xff]
          %v817 = vld [vmem:[#allocation11 + $0x1e0] sm:$0xff]
          %v818 = vld [vmem:[#allocation11 + $0x1e8] sm:$0xff]
          %v819 = vld [vmem:[#allocation11 + $0x1f0] sm:$0xff]
          %v820 = vld [vmem:[#allocation11 + $0x1f8] sm:$0xff]
          %v821 = vperm.slane %v489, 6
          %822 = vmatpush.msra.mxu0 %v772
          %823 = vmatpush.msra.mxu0 %v771
          %824 = vmatpush.msra.mxu0 %v770
          %825 = vmatpush.msra.mxu0 %v769
          %826 = vmatpush.msra.mxu0 %v768
          %827 = vmatpush.msra.mxu0 %v767
          %828 = vmatpush.msra.mxu0 %v766
          %829 = vmatpush.msra.mxu0 %v765
          %830 = vmatpush.msra.mxu0 %v764
          %831 = vmatpush.msra.mxu0 %v763
          %832 = vmatpush.msra.mxu0 %v762
          %833 = vmatpush.msra.mxu0 %v761
          %834 = vmatpush.msra.mxu0 %v760
          %835 = vmatpush.msra.mxu0 %v759
          %836 = vmatpush.msra.mxu0 %v758
          %837 = vmatpush.msra.mxu0 %v757
          %838 = vmatmul.f32.gmra.mxu0 %v753
          %v839 = vpop.f32.mrf.mxu0
          %v840 = vadd.f32 %v821, %v839
          %841 = vdwg.mxu0
          %842 = vmatpush.msra.mxu0 %v788
          %843 = vmatpush.msra.mxu0 %v787
          %844 = vmatpush.msra.mxu0 %v786
          %845 = vmatpush.msra.mxu0 %v785
          %846 = vmatpush.msra.mxu0 %v784
          %847 = vmatpush.msra.mxu0 %v783
          %848 = vmatpush.msra.mxu0 %v782
          %849 = vmatpush.msra.mxu0 %v781
          %850 = vmatpush.msra.mxu0 %v780
          %851 = vmatpush.msra.mxu0 %v779
          %852 = vmatpush.msra.mxu0 %v778
          %853 = vmatpush.msra.mxu0 %v777
          %854 = vmatpush.msra.mxu0 %v776
          %855 = vmatpush.msra.mxu0 %v775
          %856 = vmatpush.msra.mxu0 %v774
          %857 = vmatpush.msra.mxu0 %v773
          %858 = vmatmul.f32.gmra.mxu0 %v754
          %v859 = vpop.f32.mrf.mxu0
          %v860 = vadd.f32 %v840, %v859
          %861 = vdwg.mxu0
          %862 = vmatpush.msra.mxu0 %v804
          %863 = vmatpush.msra.mxu0 %v803
          %864 = vmatpush.msra.mxu0 %v802
          %865 = vmatpush.msra.mxu0 %v801
          %866 = vmatpush.msra.mxu0 %v800
          %867 = vmatpush.msra.mxu0 %v799
          %868 = vmatpush.msra.mxu0 %v798
          %869 = vmatpush.msra.mxu0 %v797
          %870 = vmatpush.msra.mxu0 %v796
          %871 = vmatpush.msra.mxu0 %v795
          %872 = vmatpush.msra.mxu0 %v794
          %873 = vmatpush.msra.mxu0 %v793
          %874 = vmatpush.msra.mxu0 %v792
          %875 = vmatpush.msra.mxu0 %v791
          %876 = vmatpush.msra.mxu0 %v790
          %877 = vmatpush.msra.mxu0 %v789
          %878 = vmatmul.f32.gmra.mxu0 %v755
          %v879 = vpop.f32.mrf.mxu0
          %v880 = vadd.f32 %v860, %v879
          %881 = vdwg.mxu0
          %882 = vmatpush.msra.mxu0 %v820
          %883 = vmatpush.msra.mxu0 %v819
          %884 = vmatpush.msra.mxu0 %v818
          %885 = vmatpush.msra.mxu0 %v817
          %886 = vmatpush.msra.mxu0 %v816
          %887 = vmatpush.msra.mxu0 %v815
          %888 = vmatpush.msra.mxu0 %v814
          %889 = vmatpush.msra.mxu0 %v813
          %890 = vmatpush.msra.mxu0 %v812
          %891 = vmatpush.msra.mxu0 %v811
          %892 = vmatpush.msra.mxu0 %v810
          %893 = vmatpush.msra.mxu0 %v809
          %894 = vmatpush.msra.mxu0 %v808
          %895 = vmatpush.msra.mxu0 %v807
          %896 = vmatpush.msra.mxu0 %v806
          %897 = vmatpush.msra.mxu0 %v805
          %898 = vmatmul.f32.gmra.mxu0 %v756
          %v899 = vpop.f32.mrf.mxu0
          %v900 = vadd.f32 %v880, %v899
          %901 = vdwg.mxu0
          %902 = vst [vmem:[%s401] sm:$0xff] %v900
        $region80: #{tpu_custom_call.1} parent=47 // pred_fallthru
          _
        %s903 = sand.u32 %s206, 1
        %s904 = scalar_lea.sflag [#allocation5], %s903
        %s905 = sand.u32 %s206, 1
        %s906 = smul.addr %s905, 8
        %s907 = scalar_lea.vmem [#allocation14], %s906
        // Predicated region
        $region81: #{tpu_custom_call.1} parent=47 // pred_check
          %p908 = pneg %p216
        $region82: #{tpu_custom_call.1} parent=47 // pred_check_branch
          %910 = sbr.rel (%p908) target = $region84
        $region83: #{tpu_custom_call.1} parent=47 // pred_region
          %912 = vsyncadd %s904, 0
          %s913 = smul.addr %s31, 8
          %s914 = scalar_lea.hbm %s7, %s913
          %s916 = sshll.u32 %s907, 4
          %s917 = int_to_ptr.vmem [resolvable:$true] %s916
          %s918 = sshll.u32 %s914, 4
          %s919 = int_to_ptr.hbm [resolvable:$true] %s918
          %921 = dma.vmem_to_hbm [thread:$0]  %s917, 128, %s919, %s904
        $region84: #{tpu_custom_call.1} parent=47 // pred_fallthru
          _
      $region48: #{tpu_custom_call.1} parent=5 // pred_fallthru
        _
      %p922 = scmp.le.s32.totalorder 2, %s22
      // Predicated region
      $region85: #{tpu_custom_call.1} parent=5 // pred_check
        %p923 = pneg %p922
      $region86: #{tpu_custom_call.1} parent=5 // pred_check_branch
        %925 = sbr.rel (%p923) target = $region88
      $region87: #{tpu_custom_call.1} parent=5 // pred_region
        %s926 = ssub.s32 %s22, 2
        // Predicated region
        $region89: #{tpu_custom_call.1} parent=87 // pred_check
          %p927 = pneg %p222
        $region90: #{tpu_custom_call.1} parent=87 // pred_check_branch
          %929 = sbr.rel (%p927) target = $region92
        $region91: #{tpu_custom_call.1} parent=87 // pred_region
          %s930 = sand.u32 %s207, 1
          %s931 = scalar_lea.sflag [#allocation5], %s930
          %s932 = sand.u32 %s207, 1
          %s933 = smul.addr %s932, 8
          %s934 = scalar_lea.vmem [#allocation14], %s933
          %936 = dma.done %s931, 128
        $region92: #{tpu_custom_call.1} parent=87 // pred_fallthru
          _
      $region88: #{tpu_custom_call.1} parent=5 // pred_fallthru
        _
    $region6: #{tpu_custom_call.1} parent=1 // loop_footer
      %s26 = sadd.s32 1, %s22
    $region7: #{tpu_custom_call.1} parent=1 // loop_footer_branch
      %21 = sbr.rel target = $region3
    $region8: #{tpu_custom_call.1} parent=1 // loop_exit
      _
    %937 = vsyncpa [#allocation4], 1
    %s938 = scalar_lea.sflag [#allocation4], 1
    %939 = vsyncpa %s938, 1
    %940 = vsyncpa [#allocation7], 1
    %941 = vsyncpa [#allocation10], 1
    %942 = vsyncpa [#allocation13], 1
    %943 = vsyncpa [#allocation5], 1
    %s944 = scalar_lea.sflag [#allocation5], 1
    %945 = vsyncpa %s944, 1

</llo_original>
